<compile_context>
chip_gen: v7x
topology: tpu7x:2x2x1
jax: 0.10.0
libtpu: 0.0.40
codegen_flags: <defaults>
</compile_context>

<pallas_src>
import functools

import jax
import jax.numpy as jnp
from jax import lax
from jax.experimental import pallas as pl
from jax.experimental.pallas import tpu as pltpu

# Deterministic module parameters (from LotkaVolterra.__init__).
A = 1.5
ALPHA = 1.0
B = 3.0
BETA = 1.0

SUB = 8                  # sublanes per f32 vreg
MIN_LANES = 128          # lane width
MAX_LANE_BLOCK = 32768   # RHS path: (8, 32768) f32 = 1 MiB per species per block
RK4_LANE_BLOCK = 4096    # RK4 path: (8, 4096) f32 = 128 KiB (compute bound)


def _ceil_to(x, m):
    return -(-x // m) * m


# ----------------------------- kernels --------------------------------------

def _lv_rhs_kernel(x_ref, y_ref, dx_ref, dy_ref):
    """Elementwise LV RHS on full (SUB, lanes) planes. Scalar-immediate math."""
    x = x_ref[...]
    y = y_ref[...]
    xy = x * y
    dx_ref[...] = A * x - ALPHA * xy
    dy_ref[...] = BETA * xy - B * y


def _lv_rk4_kernel(x_ref, y_ref, xo_ref, yo_ref, *, dt, num_steps):
    """Full RK4 trajectory in one kernel launch (state carried in vregs)."""
    dt = float(dt)
    half_dt = 0.5 * dt
    sixth_dt = dt / 6.0

    def rhs(x, y):
        xy = x * y
        return A * x - ALPHA * xy, BETA * xy - B * y

    def step(_, carry):
        x, y = carry
        k1x, k1y = rhs(x, y)
        k2x, k2y = rhs(x + half_dt * k1x, y + half_dt * k1y)
        k3x, k3y = rhs(x + half_dt * k2x, y + half_dt * k2y)
        k4x, k4y = rhs(x + dt * k3x, y + dt * k3y)
        x = x + sixth_dt * (k1x + 2.0 * k2x + 2.0 * k3x + k4x)
        y = y + sixth_dt * (k1y + 2.0 * k2y + 2.0 * k3y + k4y)
        return (x, y)

    xT, yT = lax.fori_loop(0, num_steps, step, (x_ref[...], y_ref[...]),
                           unroll=2)
    xo_ref[...] = xT
    yo_ref[...] = yT


# ----------------------------- layout plumbing ------------------------------

def _pack_planes(y, max_lane_block):
    """(2, N) f32 -> two (SUB, cols) species planes; pads ragged N."""
    y = jnp.asarray(y, jnp.float32)
    assert y.ndim == 2 and y.shape[0] == 2, "expected state of shape (2, N)"
    n = y.shape[1]
    cols = _ceil_to(_ceil_to(n, SUB * MIN_LANES) // SUB, MIN_LANES)
    lane_block = min(int(max_lane_block), cols)
    cols = _ceil_to(cols, lane_block)
    n_pad = cols * SUB
    if n_pad != n:
        y = jnp.pad(y, ((0, 0), (0, n_pad - n)))
    x_plane = y[0].reshape(SUB, cols)
    y_plane = y[1].reshape(SUB, cols)
    return x_plane, y_plane, cols, lane_block, n


def _unpack_planes(x_plane, y_plane, n):
    return jnp.stack([x_plane.reshape(-1)[:n], y_plane.reshape(-1)[:n]])


# ----------------------------- public entry points --------------------------

def lotka_volterra_rhs_batched(y):
    """RHS for N independent systems; y is (2, N) f32 (ragged N is padded)."""
    xp, yp, cols, lb, n = _pack_planes(y, MAX_LANE_BLOCK)
    spec = pl.BlockSpec((SUB, lb), lambda i: (0, i))
    dx, dy = pl.pallas_call(
        _lv_rhs_kernel,
        out_shape=(jax.ShapeDtypeStruct((SUB, cols), jnp.float32),
                   jax.ShapeDtypeStruct((SUB, cols), jnp.float32)),
        grid=(cols // lb,),
        in_specs=[spec, spec],
        out_specs=(spec, spec),
        compiler_params=pltpu.CompilerParams(
            dimension_semantics=("parallel",)),
    )(xp, yp)
    return _unpack_planes(dx, dy, n)


def lotka_volterra_forward(t, y):
    """Matches LotkaVolterra.forward(t, y); y has shape (2,), returns (2,) f32.

    Note: for a single (2,) state the pallas_call launch cost dominates;
    batch many states via lotka_volterra_rhs_batched for real throughput.
    """
    del t  # unused, as in the PyTorch module
    y2 = jnp.asarray(y, jnp.float32).reshape(2, 1)
    return lotka_volterra_rhs_batched(y2)[:, 0]


def lotka_volterra_integrate_batched(y0, dt, num_steps):
    """RK4-integrate N independent systems fully inside one Pallas kernel.

    y0 is (2, N) f32; returns the state at t0 + num_steps * dt, shape (2, N).
    """
    xp, yp, cols, lb, n = _pack_planes(y0, RK4_LANE_BLOCK)
    kernel = functools.partial(
        _lv_rk4_kernel, dt=float(dt), num_steps=int(num_steps))
    spec = pl.BlockSpec((SUB, lb), lambda i: (0, i))
    xT, yT = pl.pallas_call(
        kernel,
        out_shape=(jax.ShapeDtypeStruct((SUB, cols), jnp.float32),
                   jax.ShapeDtypeStruct((SUB, cols), jnp.float32)),
        grid=(cols // lb,),
        in_specs=[spec, spec],
        out_specs=(spec, spec),
        compiler_params=pltpu.CompilerParams(
            dimension_semantics=("parallel",)),
    )(xp, yp)
    return _unpack_planes(xT, yT, n)


def lotka_volterra_integrate(y0, dt, num_steps):
    """Single-IC RK4 trajectory (routes through the batched fused kernel)."""
    y2 = jnp.asarray(y0, jnp.float32).reshape(2, 1)
    return lotka_volterra_integrate_batched(y2, dt, num_steps)[:, 0]


# ----------------------------- references -----------------------------------

def _reference_rhs(y):
    x, yy = y[0], y[1]
    return jnp.stack([A * x - ALPHA * x * yy, -B * yy + BETA * x * yy])


def _reference_rk4(y0, dt, num_steps):
    dtf = jnp.float32(dt)

    def step(_, y):
        k1 = _reference_rhs(y)
        k2 = _reference_rhs(y + 0.5 * dtf * k1)
        k3 = _reference_rhs(y + 0.5 * dtf * k2)
        k4 = _reference_rhs(y + dtf * k3)
        return y + (dtf / 6.0) * (k1 + 2.0 * k2 + 2.0 * k3 + k4)

    return lax.fori_loop(0, num_steps, step, jnp.asarray(y0, jnp.float32))


if __name__ == "__main__":
    key = jax.random.PRNGKey(0)
    # Small positive state (prey, predator), shape (2,) as in the module spec.
    y0 = jax.random.uniform(key, (2,), jnp.float32, minval=0.5, maxval=2.0)
    t0 = jnp.float32(0.0)

    # 1) Faithful forward pass (single RHS evaluation).
    out = jax.block_until_ready(lotka_volterra_forward(t0, y0))
    ref = _reference_rhs(y0)
    assert out.shape == (2,) and out.dtype == jnp.float32
    assert jnp.allclose(out, ref, rtol=1e-6, atol=1e-6)

    # 2) Lane+sublane-dense batched RHS (2048 independent systems).
    n = 2048
    yb = jax.random.uniform(
        jax.random.PRNGKey(1), (2, n), jnp.float32, minval=0.5, maxval=2.0)
    outb = jax.block_until_ready(lotka_volterra_rhs_batched(yb))
    assert outb.shape == (2, n)
    assert jnp.allclose(outb, _reference_rhs(yb), rtol=1e-6, atol=1e-6)

    # 2b) Ragged batch (exercises the padding path).
    nr = 300
    yr = jax.random.uniform(
        jax.random.PRNGKey(2), (2, nr), jnp.float32, minval=0.5, maxval=2.0)
    outr = jax.block_until_ready(lotka_volterra_rhs_batched(yr))
    assert outr.shape == (2, nr)
    assert jnp.allclose(outr, _reference_rhs(yr), rtol=1e-6, atol=1e-6)

    # 3) Whole RK4 trajectory fused into one kernel launch (batched ICs).
    dt, steps = 0.01, 32
    nb = 1024
    y0b = jax.random.uniform(
        jax.random.PRNGKey(3), (2, nb), jnp.float32, minval=0.5, maxval=2.0)
    yTb = jax.block_until_ready(lotka_volterra_integrate_batched(y0b, dt, steps))
    yTb_ref = _reference_rk4(y0b, dt, steps)
    assert jnp.allclose(yTb, yTb_ref, rtol=1e-5, atol=1e-5)

    # 3b) Single-IC trajectory (same fused kernel).
    yT = jax.block_until_ready(lotka_volterra_integrate(y0, dt, steps))
    yT_ref = _reference_rk4(y0, dt, steps)
    assert jnp.allclose(yT, yT_ref, rtol=1e-5, atol=1e-5)

    print("KERNEL_OK")
</pallas_src>

<mosaic_0001>
module attributes {stable_mosaic.version = 11 : i64} {
  func.func @_lv_rhs_kernel(%arg0: i32, %arg1: memref<8x128xf32, #tpu.memory_space<vmem>>, %arg2: memref<8x128xf32, #tpu.memory_space<vmem>>, %arg3: memref<8x128xf32, #tpu.memory_space<vmem>>, %arg4: memref<8x128xf32, #tpu.memory_space<vmem>>) attributes {dimension_semantics = [#tpu.dimension_semantics<parallel>], iteration_bounds = array<i64: 1>, scalar_prefetch = 0 : i64, scratch_operands = 0 : i64, tpu.core_type = #tpu.core_type<tc>, window_params = [{transform_indices = @transform_0, window_bounds = array<i64: 8, 128>}, {transform_indices = @transform_1, window_bounds = array<i64: 8, 128>}, {transform_indices = @transform_2, window_bounds = array<i64: 8, 128>}, {transform_indices = @transform_3, window_bounds = array<i64: 8, 128>}]} {
    %c0 = arith.constant 0 : index
    %c0_0 = arith.constant 0 : index
    %0 = vector.load %arg1[%c0, %c0_0] : memref<8x128xf32, #tpu.memory_space<vmem>>, vector<8x128xf32>
    %c0_1 = arith.constant 0 : index
    %c0_2 = arith.constant 0 : index
    %1 = vector.load %arg2[%c0_1, %c0_2] : memref<8x128xf32, #tpu.memory_space<vmem>>, vector<8x128xf32>
    %2 = arith.mulf %0, %1 : vector<8x128xf32>
    %cst = arith.constant 1.500000e+00 : f32
    %3 = vector.broadcast %cst : f32 to vector<8x128xf32>
    %4 = arith.mulf %3, %0 : vector<8x128xf32>
    %cst_3 = arith.constant 1.000000e+00 : f32
    %5 = vector.broadcast %cst_3 : f32 to vector<8x128xf32>
    %6 = arith.mulf %5, %2 : vector<8x128xf32>
    %7 = arith.subf %4, %6 : vector<8x128xf32>
    %c0_4 = arith.constant 0 : index
    %c0_5 = arith.constant 0 : index
    %8 = vector.load %arg3[%c0_4, %c0_5] : memref<8x128xf32, #tpu.memory_space<vmem>>, vector<8x128xf32>
    tpu.vector_store %arg3[%c0_4, %c0_5], %7 {strides = array<i32>} : memref<8x128xf32, #tpu.memory_space<vmem>>, vector<8x128xf32>,
    %cst_6 = arith.constant 1.000000e+00 : f32
    %9 = vector.broadcast %cst_6 : f32 to vector<8x128xf32>
    %10 = arith.mulf %9, %2 : vector<8x128xf32>
    %cst_7 = arith.constant 3.000000e+00 : f32
    %11 = vector.broadcast %cst_7 : f32 to vector<8x128xf32>
    %12 = arith.mulf %11, %1 : vector<8x128xf32>
    %13 = arith.subf %10, %12 : vector<8x128xf32>
    %c0_8 = arith.constant 0 : index
    %c0_9 = arith.constant 0 : index
    %14 = vector.load %arg4[%c0_8, %c0_9] : memref<8x128xf32, #tpu.memory_space<vmem>>, vector<8x128xf32>
    tpu.vector_store %arg4[%c0_8, %c0_9], %13 {strides = array<i32>} : memref<8x128xf32, #tpu.memory_space<vmem>>, vector<8x128xf32>,
    return
  }
  func.func @transform_0(%arg0: i32) -> (i32, i32) {
    %c0_i32 = arith.constant 0 : i32
    %c0_i32_0 = arith.constant 0 : i32
    return %c0_i32, %arg0 : i32, i32
  }
  func.func @transform_1(%arg0: i32) -> (i32, i32) {
    %c0_i32 = arith.constant 0 : i32
    %c0_i32_0 = arith.constant 0 : i32
    return %c0_i32, %arg0 : i32, i32
  }
  func.func @transform_2(%arg0: i32) -> (i32, i32) {
    %c0_i32 = arith.constant 0 : i32
    %c0_i32_0 = arith.constant 0 : i32
    return %c0_i32, %arg0 : i32, i32
  }
  func.func @transform_3(%arg0: i32) -> (i32, i32) {
    %c0_i32 = arith.constant 0 : i32
    %c0_i32_0 = arith.constant 0 : i32
    return %c0_i32, %arg0 : i32, i32
  }
}

</mosaic_0001>

<llo_original>
// kernel: tpu_custom_call.1
$region0: #{tpu_custom_call.1}
  #allocation0 [shape = 'u32[]', space=smem, size = 0x4, offset = 0x4, fixed_abs, tag = 'smem constant byte address 0x4 - core index']
  #allocation1 [shape = 'u32[144,128]{1,0:T(1,128)}', space=vmem, size = 0x12000, scoped, tag = 'internal scratch']
  %s0 = inlined_call_operand.hbm [shape: f32[8,128], index: 0, kind: input, shape index: {}]
  %s1 = inlined_call_operand.hbm [shape: f32[8,128], index: 1, kind: input, shape index: {}]
  %s2 = inlined_call_operand.hbm [shape: f32[8,128], index: 2, kind: output, shape index: {0}]
  %s3 = inlined_call_operand.hbm [shape: f32[8,128], index: 3, kind: output, shape index: {1}]
  %4 = xla_tuple %s2, %s3
  %s5 = sld [smem:[#allocation0]]
  $region34: #{tpu_custom_call.1} parent=0
    _
  %s7 = ssub.s32 1, %s5
  %s8 = scalar_select 0, %s7, %s5
  $region1: #{tpu_custom_call.1} parent=0
    #allocation2 [shape = 'u8[4096]{0}', space=vmem, size = 0x1000, scoped, tag = 'input window, operand 0, single buffered']
    #allocation3 [shape = 's32[1]{0}', space=sflag, size = 0x4, scoped, tag = 'scoped memory for tpu_custom_call.1']
    #allocation4 [shape = 's32[1]{0}', space=sflag, size = 0x4, scoped, tag = 'scoped memory for tpu_custom_call.1']
    #allocation5 [shape = 'u8[4096]{0}', space=vmem, size = 0x1000, scoped, tag = 'input window, operand 1, single buffered']
    #allocation6 [shape = 's32[1]{0}', space=sflag, size = 0x4, scoped, tag = 'scoped memory for tpu_custom_call.1']
    #allocation7 [shape = 'u8[4096]{0}', space=vmem, size = 0x1000, scoped, tag = 'output window, operand 0, single buffered']
    #allocation8 [shape = 'u8[4096]{0}', space=vmem, size = 0x1000, scoped, tag = 'output window, operand 1, single buffered']
    #allocation9 [shape = 's32[1]{0}', space=sflag, size = 0x4, scoped, tag = 'scoped memory for tpu_custom_call.1']
    %9 = vsyncpa [#allocation3], 0
    %10 = vsyncpa [#allocation6], 0
    %11 = vsyncpa [#allocation4], 0
    %12 = vsyncpa [#allocation9], 0
    // Predicated region
    $region2: #{tpu_custom_call.1} parent=1 // pred_check
      _
    $region3: #{tpu_custom_call.1} parent=1 // pred_check_branch
      %14 = sbr.rel (0) target = $region5
    $region4: #{tpu_custom_call.1} parent=1 // pred_region
      %s16 = ssub.s32 128, 128
      %17 = vsyncadd [#allocation3], %s16
      %s19 = sshll.u32 [#allocation2], 4
      %s20 = int_to_ptr.vmem [resolvable:$true] %s19
      %22 = dma.hbm_to_vmem [thread:$0]  %s0, 128, %s20, [#allocation3]
    $region5: #{tpu_custom_call.1} parent=1 // pred_fallthru
      _
    // Predicated region
    $region6: #{tpu_custom_call.1} parent=1 // pred_check
      _
    $region7: #{tpu_custom_call.1} parent=1 // pred_check_branch
      %24 = sbr.rel (0) target = $region9
    $region8: #{tpu_custom_call.1} parent=1 // pred_region
      %s26 = ssub.s32 128, 128
      %27 = vsyncadd [#allocation6], %s26
      %s29 = sshll.u32 [#allocation5], 4
      %s30 = int_to_ptr.vmem [resolvable:$true] %s29
      %32 = dma.hbm_to_vmem [thread:$0]  %s1, 128, %s30, [#allocation6]
    $region9: #{tpu_custom_call.1} parent=1 // pred_fallthru
      _
    // Predicated region
    $region10: #{tpu_custom_call.1} parent=1 // pred_check
      _
    $region11: #{tpu_custom_call.1} parent=1 // pred_check_branch
      %34 = sbr.rel (0) target = $region13
    $region12: #{tpu_custom_call.1} parent=1 // pred_region
      %35 = dma.done [#allocation3], 128
    $region13: #{tpu_custom_call.1} parent=1 // pred_fallthru
      _
    // Predicated region
    $region14: #{tpu_custom_call.1} parent=1 // pred_check
      _
    $region15: #{tpu_custom_call.1} parent=1 // pred_check_branch
      %37 = sbr.rel (0) target = $region17
    $region16: #{tpu_custom_call.1} parent=1 // pred_region
      %38 = dma.done [#allocation6], 128
    $region17: #{tpu_custom_call.1} parent=1 // pred_fallthru
      _
    %v39 = vld [vmem:[#allocation2] sm:$0xff]
    %v40 = vld [vmem:[#allocation5] sm:$0xff]
    %v41 = vmul.f32 %v39, %v40
    %v42 = vmul.f32 %v39, 1.5
    %v43 = vsub.f32 %v42, %v41
    %44 = vst [vmem:[#allocation7] sm:$0xff] %v43
    %v45 = vmul.f32 %v40, 3.0
    %v46 = vsub.f32 %v41, %v45
    %47 = vst [vmem:[#allocation8] sm:$0xff] %v46
    // Predicated region
    $region18: #{tpu_custom_call.1} parent=1 // pred_check
      _
    $region19: #{tpu_custom_call.1} parent=1 // pred_check_branch
      %49 = sbr.rel (0) target = $region21
    $region20: #{tpu_custom_call.1} parent=1 // pred_region
      %s51 = ssub.s32 128, 128
      %52 = vsyncadd [#allocation4], %s51
      %s54 = sshll.u32 [#allocation7], 4
      %s55 = int_to_ptr.vmem [resolvable:$true] %s54
      %57 = dma.vmem_to_hbm [thread:$0]  %s55, 128, %s2, [#allocation4]
    $region21: #{tpu_custom_call.1} parent=1 // pred_fallthru
      _
    // Predicated region
    $region22: #{tpu_custom_call.1} parent=1 // pred_check
      _
    $region23: #{tpu_custom_call.1} parent=1 // pred_check_branch
      %59 = sbr.rel (0) target = $region25
    $region24: #{tpu_custom_call.1} parent=1 // pred_region
      %s61 = ssub.s32 128, 128
      %62 = vsyncadd [#allocation9], %s61
      %s64 = sshll.u32 [#allocation8], 4
      %s65 = int_to_ptr.vmem [resolvable:$true] %s64
      %67 = dma.vmem_to_hbm [thread:$0]  %s65, 128, %s3, [#allocation9]
    $region25: #{tpu_custom_call.1} parent=1 // pred_fallthru
      _
    // Predicated region
    $region26: #{tpu_custom_call.1} parent=1 // pred_check
      _
    $region27: #{tpu_custom_call.1} parent=1 // pred_check_branch
      %69 = sbr.rel (0) target = $region29
    $region28: #{tpu_custom_call.1} parent=1 // pred_region
      %70 = dma.done [#allocation4], 128
    $region29: #{tpu_custom_call.1} parent=1 // pred_fallthru
      _
    // Predicated region
    $region30: #{tpu_custom_call.1} parent=1 // pred_check
      _
    $region31: #{tpu_custom_call.1} parent=1 // pred_check_branch
      %72 = sbr.rel (0) target = $region33
    $region32: #{tpu_custom_call.1} parent=1 // pred_region
      %73 = dma.done [#allocation9], 128
    $region33: #{tpu_custom_call.1} parent=1 // pred_fallthru
      _
    %74 = vsyncpa [#allocation3], 1
    %75 = vsyncpa [#allocation6], 1
    %76 = vsyncpa [#allocation4], 1
    %77 = vsyncpa [#allocation9], 1

</llo_original>
